<compile_context>
chip_gen: v7x
topology: tpu7x:2x2x1
jax: 0.10.0
libtpu: 0.0.40
codegen_flags: <defaults>
</compile_context>

<pallas_src>
import functools

import jax
import jax.numpy as jnp
from jax.experimental import pallas as pl
from jax.experimental.pallas import tpu as pltpu


def _round_up(x, m):
    return ((x + m - 1) // m) * m


# ----------------------------------------------------------------------------
# Pallas kernel: encoder stand-in dense (CLS only) + fc1/ReLU + fused head
#   e    = tanh(cls @ W_enc + b_enc) * mask_cls
#   h    = relu(e @ W1 + b1)
#   z    = h @ [W_leaf | W_risk | 0] + [b_leaf | b_risk | 0]     (128-lane pad)
#   out  = z, with sigmoid applied only to the risk column
# ----------------------------------------------------------------------------
def symptom_kernel(cls_ref, mask_ref, wenc_ref, benc_ref, w1_ref, b1_ref,
                   wo_ref, bo_ref, out_ref, *, risk_col):
    cls = cls_ref[...]                                                 # (TB, H_enc) bf16
    e = jnp.dot(cls, wenc_ref[...],
                preferred_element_type=jnp.float32) + benc_ref[...]
    e = jnp.tanh(e) * mask_ref[...]                                    # EUP tanh, f32

    h = jnp.dot(e.astype(w1_ref.dtype), w1_ref[...],
                preferred_element_type=jnp.float32) + b1_ref[...]
    h = jnp.maximum(h, 0.0)                                            # (TB, hidden) f32

    z = jnp.dot(h.astype(wo_ref.dtype), wo_ref[...],
                preferred_element_type=jnp.float32) + bo_ref[...]      # (TB, OUT_PAD)

    col = jax.lax.broadcasted_iota(jnp.int32, z.shape, dimension=1)
    out_ref[...] = jnp.where(col == risk_col,
                             jax.nn.sigmoid(z), z).astype(out_ref.dtype)


def symptom_head(cls_emb, mask_cls, w_enc, b_enc, w1, b1, w_out, b_out,
                 *, n_labels, block_b=256):
    B, h_enc = cls_emb.shape
    hidden = w1.shape[1]
    out_pad = w_out.shape[1]

    # Batch tile: multiple of 8 sublanes, capped at block_b for VMEM budget
    # (sized conservatively so double-buffered tiles + resident weights stay
    # far under v7x's 64 MiB VMEM as well as v5e/v6e's 128 MiB).
    tb = min(block_b, _round_up(max(B, 8), 8))
    b_pad = pl.cdiv(B, tb) * tb
    if b_pad != B:
        cls_emb = jnp.pad(cls_emb, ((0, b_pad - B), (0, 0)))
        mask_cls = jnp.pad(mask_cls, ((0, b_pad - B), (0, 0)))

    kernel = functools.partial(symptom_kernel, risk_col=n_labels)
    full_block = lambda i: (0, 0)

    out = pl.pallas_call(
        kernel,
        out_shape=jax.ShapeDtypeStruct((b_pad, out_pad), jnp.float32),
        grid=(b_pad // tb,),
        in_specs=[
            pl.BlockSpec((tb, h_enc), lambda i: (i, 0)),       # cls embedding
            pl.BlockSpec((tb, 1), lambda i: (i, 0)),           # CLS attention mask
            pl.BlockSpec((h_enc, h_enc), full_block),          # W_enc
            pl.BlockSpec((1, h_enc), full_block),              # b_enc
            pl.BlockSpec((h_enc, hidden), full_block),         # W1
            pl.BlockSpec((1, hidden), full_block),             # b1
            pl.BlockSpec((hidden, out_pad), full_block),       # fused [W_leaf|W_risk|0]
            pl.BlockSpec((1, out_pad), full_block),            # fused bias
        ],
        out_specs=pl.BlockSpec((tb, out_pad), lambda i: (i, 0)),
        compiler_params=pltpu.CompilerParams(
            dimension_semantics=("parallel",)),
    )(cls_emb, mask_cls, w_enc, b_enc, w1, b1, w_out, b_out)

    leaf = out[:B, :n_labels]                  # raw logits
    risk = out[:B, n_labels:n_labels + 1]      # already sigmoid-ed in kernel
    return leaf, risk


# ----------------------------------------------------------------------------
# Deterministic parameter construction (torch.nn.Linear-style uniform init)
# ----------------------------------------------------------------------------
def _linear_params(key, fan_in, fan_out, w_dtype=jnp.bfloat16):
    kw, kb = jax.random.split(key)
    bound = 1.0 / jnp.sqrt(jnp.asarray(fan_in, jnp.float32))
    w = jax.random.uniform(kw, (fan_in, fan_out), jnp.float32, -bound, bound)
    b = jax.random.uniform(kb, (1, fan_out), jnp.float32, -bound, bound)
    return w.astype(w_dtype), b


def make_params(key, vocab, h_enc, hidden, n_labels):
    k_emb, k_enc, k_fc1, k_leaf, k_risk = jax.random.split(key, 5)
    params = {}
    params["embedding"] = (jax.random.normal(k_emb, (vocab, h_enc), jnp.float32)
                           * 0.02).astype(jnp.bfloat16)
    params["w_enc"], params["b_enc"] = _linear_params(k_enc, h_enc, h_enc)
    params["w1"], params["b1"] = _linear_params(k_fc1, h_enc, hidden)

    # Fuse fc_leaf (hidden, n_labels) and fc_risk (hidden, 1) into one GEMM
    # with a 128-lane-padded output: cols [0, n_labels) -> leaf logits,
    # col n_labels -> risk logit, remaining cols -> zero padding.
    w_leaf, b_leaf = _linear_params(k_leaf, hidden, n_labels)
    w_risk, b_risk = _linear_params(k_risk, hidden, 1)
    out_pad = _round_up(n_labels + 1, 128)
    w_out = jnp.zeros((hidden, out_pad), jnp.bfloat16)
    w_out = w_out.at[:, :n_labels].set(w_leaf)
    w_out = w_out.at[:, n_labels:n_labels + 1].set(w_risk)
    b_out = jnp.zeros((1, out_pad), jnp.float32)
    b_out = b_out.at[:, :n_labels].set(b_leaf)
    b_out = b_out.at[:, n_labels:n_labels + 1].set(b_risk)
    params["w_out"], params["b_out"] = w_out, b_out
    return params


# ----------------------------------------------------------------------------
# Full forward: CLS-only encoder stand-in (embedding gather in JAX glue;
# everything else fused into the Pallas kernel)
# ----------------------------------------------------------------------------
def symptom_net_forward(params, input_ids, attention_mask, *, n_labels):
    cls_emb = params["embedding"][input_ids[:, 0]]             # (B, H_enc) bf16
    mask_cls = attention_mask[:, 0:1].astype(jnp.float32)      # (B, 1)
    # NOTE: gating by the CLS mask assumes position 0 is always unmasked,
    # matching the original stand-in's semantics.
    return symptom_head(
        cls_emb, mask_cls,
        params["w_enc"], params["b_enc"],
        params["w1"], params["b1"],
        params["w_out"], params["b_out"],
        n_labels=n_labels,
    )


if __name__ == "__main__":
    B, S = 4, 8          # batch, sequence length
    VOCAB = 32
    H_ENC = 64           # encoder.config.hidden_size
    HIDDEN = 128         # SymptomNet hidden (module default)
    N_LABELS = 16

    key = jax.random.PRNGKey(0)
    k_params, k_ids = jax.random.split(key)

    params = make_params(k_params, VOCAB, H_ENC, HIDDEN, N_LABELS)
    input_ids = jax.random.randint(k_ids, (B, S), 0, VOCAB, dtype=jnp.int32)
    attention_mask = jnp.ones((B, S), dtype=jnp.int32)

    fwd = jax.jit(functools.partial(symptom_net_forward, n_labels=N_LABELS))
    leaf_logits, risk = fwd(params, input_ids, attention_mask)
    jax.block_until_ready((leaf_logits, risk))

    assert leaf_logits.shape == (B, N_LABELS)
    assert risk.shape == (B, 1)
    assert bool(jnp.all(jnp.isfinite(leaf_logits)))
    assert bool(jnp.all((risk >= 0.0) & (risk <= 1.0)))

    print("KERNEL_OK")
</pallas_src>

<mosaic_0001>
module attributes {stable_mosaic.version = 11 : i64} {
  func.func @symptom_kernel(%arg0: i32, %arg1: memref<8x64xbf16, #tpu.memory_space<vmem>>, %arg2: memref<8x1xf32, #tpu.memory_space<vmem>>, %arg3: memref<64x64xbf16, #tpu.memory_space<vmem>>, %arg4: memref<1x64xf32, #tpu.memory_space<vmem>>, %arg5: memref<64x128xbf16, #tpu.memory_space<vmem>>, %arg6: memref<1x128xf32, #tpu.memory_space<vmem>>, %arg7: memref<128x128xbf16, #tpu.memory_space<vmem>>, %arg8: memref<1x128xf32, #tpu.memory_space<vmem>>, %arg9: memref<8x128xf32, #tpu.memory_space<vmem>>) attributes {dimension_semantics = [#tpu.dimension_semantics<parallel>], iteration_bounds = array<i64: 1>, scalar_prefetch = 0 : i64, scratch_operands = 0 : i64, tpu.core_type = #tpu.core_type<tc>, window_params = [{transform_indices = @transform_0, window_bounds = array<i64: 8, 64>}, {transform_indices = @transform_1, window_bounds = array<i64: 8, 1>}, {pipeline_mode = #tpu.pipeline_mode<synchronous>, transform_indices = @transform_2, window_bounds = array<i64: 64, 64>}, {pipeline_mode = #tpu.pipeline_mode<synchronous>, transform_indices = @transform_3, window_bounds = array<i64: 1, 64>}, {pipeline_mode = #tpu.pipeline_mode<synchronous>, transform_indices = @transform_4, window_bounds = array<i64: 64, 128>}, {pipeline_mode = #tpu.pipeline_mode<synchronous>, transform_indices = @transform_5, window_bounds = array<i64: 1, 128>}, {pipeline_mode = #tpu.pipeline_mode<synchronous>, transform_indices = @transform_6, window_bounds = array<i64: 128, 128>}, {pipeline_mode = #tpu.pipeline_mode<synchronous>, transform_indices = @transform_7, window_bounds = array<i64: 1, 128>}, {transform_indices = @transform_8, window_bounds = array<i64: 8, 128>}]} {
    %c0 = arith.constant 0 : index
    %c0_0 = arith.constant 0 : index
    %0 = vector.load %arg1[%c0, %c0_0] : memref<8x64xbf16, #tpu.memory_space<vmem>>, vector<8x64xbf16>
    %c0_1 = arith.constant 0 : index
    %c0_2 = arith.constant 0 : index
    %1 = vector.load %arg3[%c0_1, %c0_2] : memref<64x64xbf16, #tpu.memory_space<vmem>>, vector<64x64xbf16>
    %cst = arith.constant dense<0.000000e+00> : vector<8x64xf32>
    %2 = tpu.matmul %0, %1, %cst {dimension_numbers = #tpu.dot_dimension_numbers<[1], [0], [0], [1], [0, 0, 1, 1], [], []>} : vector<8x64xbf16>, vector<64x64xbf16>, vector<8x64xf32> -> vector<8x64xf32>
    %c0_3 = arith.constant 0 : index
    %c0_4 = arith.constant 0 : index
    %3 = vector.load %arg4[%c0_3, %c0_4] : memref<1x64xf32, #tpu.memory_space<vmem>>, vector<1x64xf32>
    %4 = vector.broadcast %3 : vector<1x64xf32> to vector<8x64xf32>
    %5 = arith.addf %2, %4 : vector<8x64xf32>
    %6 = math.tanh %5 : vector<8x64xf32>
    %c0_5 = arith.constant 0 : index
    %c0_6 = arith.constant 0 : index
    %7 = vector.load %arg2[%c0_5, %c0_6] : memref<8x1xf32, #tpu.memory_space<vmem>>, vector<8x1xf32>
    %8 = vector.broadcast %7 : vector<8x1xf32> to vector<8x64xf32>
    %9 = arith.mulf %6, %8 : vector<8x64xf32>
    %10 = arith.truncf %9 : vector<8x64xf32> to vector<8x64xbf16>
    %c0_7 = arith.constant 0 : index
    %c0_8 = arith.constant 0 : index
    %11 = vector.load %arg5[%c0_7, %c0_8] : memref<64x128xbf16, #tpu.memory_space<vmem>>, vector<64x128xbf16>
    %cst_9 = arith.constant dense<0.000000e+00> : vector<8x128xf32>
    %12 = tpu.matmul %10, %11, %cst_9 {dimension_numbers = #tpu.dot_dimension_numbers<[1], [0], [0], [1], [0, 0, 1, 1], [], []>} : vector<8x64xbf16>, vector<64x128xbf16>, vector<8x128xf32> -> vector<8x128xf32>
    %c0_10 = arith.constant 0 : index
    %c0_11 = arith.constant 0 : index
    %13 = vector.load %arg6[%c0_10, %c0_11] : memref<1x128xf32, #tpu.memory_space<vmem>>, vector<1x128xf32>
    %14 = vector.broadcast %13 : vector<1x128xf32> to vector<8x128xf32>
    %15 = arith.addf %12, %14 : vector<8x128xf32>
    %cst_12 = arith.constant 0.000000e+00 : f32
    %16 = vector.broadcast %cst_12 : f32 to vector<8x128xf32>
    %17 = arith.maximumf %15, %16 : vector<8x128xf32>
    %18 = arith.truncf %17 : vector<8x128xf32> to vector<8x128xbf16>
    %c0_13 = arith.constant 0 : index
    %c0_14 = arith.constant 0 : index
    %19 = vector.load %arg7[%c0_13, %c0_14] : memref<128x128xbf16, #tpu.memory_space<vmem>>, vector<128x128xbf16>
    %cst_15 = arith.constant dense<0.000000e+00> : vector<8x128xf32>
    %20 = tpu.matmul %18, %19, %cst_15 {dimension_numbers = #tpu.dot_dimension_numbers<[1], [0], [0], [1], [0, 0, 1, 1], [], []>} : vector<8x128xbf16>, vector<128x128xbf16>, vector<8x128xf32> -> vector<8x128xf32>
    %c0_16 = arith.constant 0 : index
    %c0_17 = arith.constant 0 : index
    %21 = vector.load %arg8[%c0_16, %c0_17] : memref<1x128xf32, #tpu.memory_space<vmem>>, vector<1x128xf32>
    %22 = vector.broadcast %21 : vector<1x128xf32> to vector<8x128xf32>
    %23 = arith.addf %20, %22 : vector<8x128xf32>
    %24 = tpu.iota {dimensions = array<i32: 1>} : vector<8x128xi32>
    %c16_i32 = arith.constant 16 : i32
    %25 = vector.broadcast %c16_i32 : i32 to vector<8x128xi32>
    %26 = arith.cmpi eq, %24, %25 : vector<8x128xi32>
    %27 = arith.negf %23 : vector<8x128xf32>
    %28 = math.exp %27 : vector<8x128xf32>
    %cst_18 = arith.constant 1.000000e+00 : f32
    %29 = vector.broadcast %cst_18 : f32 to vector<8x128xf32>
    %30 = arith.addf %29, %28 : vector<8x128xf32>
    %31 = arith.divf %29, %30 : vector<8x128xf32>
    %32 = arith.select %26, %31, %23 : vector<8x128xi1>, vector<8x128xf32>
    %c0_19 = arith.constant 0 : index
    %c0_20 = arith.constant 0 : index
    %33 = vector.load %arg9[%c0_19, %c0_20] : memref<8x128xf32, #tpu.memory_space<vmem>>, vector<8x128xf32>
    tpu.vector_store %arg9[%c0_19, %c0_20], %32 {strides = array<i32>} : memref<8x128xf32, #tpu.memory_space<vmem>>, vector<8x128xf32>,
    return
  }
  func.func @transform_0(%arg0: i32) -> (i32, i32) {
    %c0_i32 = arith.constant 0 : i32
    %c0_i32_0 = arith.constant 0 : i32
    return %arg0, %c0_i32 : i32, i32
  }
  func.func @transform_1(%arg0: i32) -> (i32, i32) {
    %c0_i32 = arith.constant 0 : i32
    %c0_i32_0 = arith.constant 0 : i32
    return %arg0, %c0_i32 : i32, i32
  }
  func.func @transform_2(%arg0: i32) -> (i32, i32) {
    %c0_i32 = arith.constant 0 : i32
    %c0_i32_0 = arith.constant 0 : i32
    %c0_i32_1 = arith.constant 0 : i32
    return %c0_i32, %c0_i32_0 : i32, i32
  }
  func.func @transform_3(%arg0: i32) -> (i32, i32) {
    %c0_i32 = arith.constant 0 : i32
    %c0_i32_0 = arith.constant 0 : i32
    %c0_i32_1 = arith.constant 0 : i32
    return %c0_i32, %c0_i32_0 : i32, i32
  }
  func.func @transform_4(%arg0: i32) -> (i32, i32) {
    %c0_i32 = arith.constant 0 : i32
    %c0_i32_0 = arith.constant 0 : i32
    %c0_i32_1 = arith.constant 0 : i32
    return %c0_i32, %c0_i32_0 : i32, i32
  }
  func.func @transform_5(%arg0: i32) -> (i32, i32) {
    %c0_i32 = arith.constant 0 : i32
    %c0_i32_0 = arith.constant 0 : i32
    %c0_i32_1 = arith.constant 0 : i32
    return %c0_i32, %c0_i32_0 : i32, i32
  }
  func.func @transform_6(%arg0: i32) -> (i32, i32) {
    %c0_i32 = arith.constant 0 : i32
    %c0_i32_0 = arith.constant 0 : i32
    %c0_i32_1 = arith.constant 0 : i32
    return %c0_i32, %c0_i32_0 : i32, i32
  }
  func.func @transform_7(%arg0: i32) -> (i32, i32) {
    %c0_i32 = arith.constant 0 : i32
    %c0_i32_0 = arith.constant 0 : i32
    %c0_i32_1 = arith.constant 0 : i32
    return %c0_i32, %c0_i32_0 : i32, i32
  }
  func.func @transform_8(%arg0: i32) -> (i32, i32) {
    %c0_i32 = arith.constant 0 : i32
    %c0_i32_0 = arith.constant 0 : i32
    return %arg0, %c0_i32 : i32, i32
  }
}

</mosaic_0001>

<llo_original>
// kernel: symptom_net_forward.1
$region0: #{symptom_net_forward.1}
  #allocation0 [shape = 'u32[]', space=smem, size = 0x4, offset = 0x4, fixed_abs, tag = 'smem constant byte address 0x4 - core index']
  #allocation1 [shape = 'u32[144,128]{1,0:T(1,128)}', space=vmem, size = 0x12000, scoped, tag = 'internal scratch']
  %s0 = inlined_call_operand.vmem [shape: bf16[8,64], index: 0, kind: input, shape index: {}]
  %s1 = inlined_call_operand.vmem [shape: f32[8,1], index: 1, kind: input, shape index: {}]
  %s2 = inlined_call_operand.hbm [shape: bf16[64,64], index: 2, kind: input, shape index: {}]
  %s3 = inlined_call_operand.vmem [shape: f32[1,64], index: 3, kind: input, shape index: {}]
  %s4 = inlined_call_operand.hbm [shape: bf16[64,128], index: 4, kind: input, shape index: {}]
  %s5 = inlined_call_operand.vmem [shape: f32[1,128], index: 5, kind: input, shape index: {}]
  %s6 = inlined_call_operand.vmem [shape: bf16[128,128], index: 6, kind: input, shape index: {}]
  %s7 = inlined_call_operand.vmem [shape: f32[1,128], index: 7, kind: input, shape index: {}]
  %s8 = inlined_call_operand.vmem [shape: f32[8,128], index: 8, kind: output, shape index: {}]
  %s9 = sld [smem:[#allocation0]]
  $region50: #{symptom_net_forward.1} parent=0
    _
  %s11 = ssub.s32 1, %s9
  %s12 = scalar_select 0, %s11, %s9
  $region1: #{symptom_net_forward.1} parent=0
    #allocation2 [shape = 'u8[16384]{0}', space=vmem, size = 0x4000, scoped, tag = 'input window, operand 2, single buffered']
    #allocation3 [shape = 's32[1]{0}', space=sflag, size = 0x4, scoped, tag = 'scoped memory for symptom_net_forward.1']
    #allocation4 [shape = 'u8[16384]{0}', space=vmem, size = 0x4000, scoped, tag = 'input window, operand 4, single buffered']
    #allocation5 [shape = 's32[1]{0}', space=sflag, size = 0x4, scoped, tag = 'scoped memory for symptom_net_forward.1']
    %13 = vsyncpa [#allocation3], 0
    %14 = vsyncpa [#allocation5], 0
    // Predicated region
    $region2: #{symptom_net_forward.1} parent=1 // pred_check
      _
    $region3: #{symptom_net_forward.1} parent=1 // pred_check_branch
      %16 = sbr.rel (0) target = $region5
    $region4: #{symptom_net_forward.1} parent=1 // pred_region
      _
    $region5: #{symptom_net_forward.1} parent=1 // pred_fallthru
      _
    // Predicated region
    $region6: #{symptom_net_forward.1} parent=1 // pred_check
      _
    $region7: #{symptom_net_forward.1} parent=1 // pred_check_branch
      %18 = sbr.rel (0) target = $region9
    $region8: #{symptom_net_forward.1} parent=1 // pred_region
      _
    $region9: #{symptom_net_forward.1} parent=1 // pred_fallthru
      _
    // Predicated region
    $region10: #{symptom_net_forward.1} parent=1 // pred_check
      _
    $region11: #{symptom_net_forward.1} parent=1 // pred_check_branch
      %20 = sbr.rel (0) target = $region13
    $region12: #{symptom_net_forward.1} parent=1 // pred_region
      %s22 = ssub.s32 512, 512
      %23 = vsyncadd [#allocation3], %s22
      %s24 = sshll.u32 [#allocation2], 4
      %s25 = int_to_ptr.vmem [resolvable:$true] %s24
      %30 = dma.hbm_to_vmem [thread:$0]  %s2, 512, %s25, [#allocation3], 64, 64, 4
    $region13: #{symptom_net_forward.1} parent=1 // pred_fallthru
      _
    // Predicated region
    $region14: #{symptom_net_forward.1} parent=1 // pred_check
      _
    $region15: #{symptom_net_forward.1} parent=1 // pred_check_branch
      %32 = sbr.rel (0) target = $region17
    $region16: #{symptom_net_forward.1} parent=1 // pred_region
      _
    $region17: #{symptom_net_forward.1} parent=1 // pred_fallthru
      _
    // Predicated region
    $region18: #{symptom_net_forward.1} parent=1 // pred_check
      _
    $region19: #{symptom_net_forward.1} parent=1 // pred_check_branch
      %34 = sbr.rel (0) target = $region21
    $region20: #{symptom_net_forward.1} parent=1 // pred_region
      %s36 = ssub.s32 512, 512
      %37 = vsyncadd [#allocation5], %s36
      %s38 = sshll.u32 [#allocation4], 4
      %s39 = int_to_ptr.vmem [resolvable:$true] %s38
      %44 = dma.hbm_to_vmem [thread:$0]  %s4, 512, %s39, [#allocation5], 64, 64, 4
    $region21: #{symptom_net_forward.1} parent=1 // pred_fallthru
      _
    // Predicated region
    $region22: #{symptom_net_forward.1} parent=1 // pred_check
      _
    $region23: #{symptom_net_forward.1} parent=1 // pred_check_branch
      %46 = sbr.rel (0) target = $region25
    $region24: #{symptom_net_forward.1} parent=1 // pred_region
      _
    $region25: #{symptom_net_forward.1} parent=1 // pred_fallthru
      _
    // Predicated region
    $region26: #{symptom_net_forward.1} parent=1 // pred_check
      _
    $region27: #{symptom_net_forward.1} parent=1 // pred_check_branch
      %48 = sbr.rel (0) target = $region29
    $region28: #{symptom_net_forward.1} parent=1 // pred_region
      _
    $region29: #{symptom_net_forward.1} parent=1 // pred_fallthru
      _
    // Predicated region
    $region30: #{symptom_net_forward.1} parent=1 // pred_check
      _
    $region31: #{symptom_net_forward.1} parent=1 // pred_check_branch
      %50 = sbr.rel (0) target = $region33
    $region32: #{symptom_net_forward.1} parent=1 // pred_region
      _
    $region33: #{symptom_net_forward.1} parent=1 // pred_fallthru
      _
    // Predicated region
    $region34: #{symptom_net_forward.1} parent=1 // pred_check
      _
    $region35: #{symptom_net_forward.1} parent=1 // pred_check_branch
      %52 = sbr.rel (0) target = $region37
    $region36: #{symptom_net_forward.1} parent=1 // pred_region
      %53 = dma.done [#allocation3], 512
    $region37: #{symptom_net_forward.1} parent=1 // pred_fallthru
      _
    // Predicated region
    $region38: #{symptom_net_forward.1} parent=1 // pred_check
      _
    $region39: #{symptom_net_forward.1} parent=1 // pred_check_branch
      %55 = sbr.rel (0) target = $region41
    $region40: #{symptom_net_forward.1} parent=1 // pred_region
      %56 = dma.done [#allocation5], 512
    $region41: #{symptom_net_forward.1} parent=1 // pred_fallthru
      _
    %v58 = vld [vmem:[%s0] sm:$0xf]
    %v59 = vld [vmem:[#allocation2] sm:$0xf]
    %v60 = vld [vmem:[#allocation2 + $0x4] sm:$0xf]
    %v61 = vld [vmem:[#allocation2 + $0x8] sm:$0xf]
    %v62 = vld [vmem:[#allocation2 + $0xc] sm:$0xf]
    %v63 = vld [vmem:[#allocation2 + $0x10] sm:$0xf]
    %v64 = vld [vmem:[#allocation2 + $0x14] sm:$0xf]
    %v65 = vld [vmem:[#allocation2 + $0x18] sm:$0xf]
    %v66 = vld [vmem:[#allocation2 + $0x1c] sm:$0xf]
    %v67 = vld [vmem:[%s3] sm:$0x1]
    %v69 = vlaneseq
    %v70 = vshrl.u32 %v69, 7
    %v71 = vsub.s32 0, %v70
    %v72 = vrot.slane %v67, %v71
    %v82 = vunpack.c.l.b16 %v59
    %v83 = vunpack.c.l.b16 %v60
    %v84 = vunpack.c.l.b16 %v61
    %v85 = vunpack.c.l.b16 %v62
    %v86 = vunpack.c.l.b16 %v63
    %v87 = vunpack.c.l.b16 %v64
    %v88 = vunpack.c.l.b16 %v65
    %v89 = vunpack.c.l.b16 %v66
    %v90 = vpack.c.b16 %v83, %v82
    %v91 = vpack.c.b16 %v85, %v84
    %v92 = vpack.c.b16 %v87, %v86
    %v93 = vpack.c.b16 %v89, %v88
    %vm98 = vcmask 523264
    %v100 = vsel %vm98, %v58, 0
    %102 = vmatprep.subr.bf16.mxu0 0
    %103 = vmatpush1.bf16.msra.mxu0 %v90
    %104 = vmatprep.subr.bf16.mxu0 0
    %105 = vmatpush1.bf16.msra.mxu0 %v91
    %106 = vmatprep.subr.bf16.mxu0 0
    %107 = vmatpush1.bf16.msra.mxu0 %v92
    %108 = vmatprep.subr.bf16.mxu0 0
    %109 = vmatpush1.bf16.msra.mxu0 %v93
    %110 = vmatprep.subr.bf16.mxu0 0
    %111 = vmatpush1.bf16.msra.mxu0 0
    %112 = vmatprep.subr.bf16.mxu0 0
    %113 = vmatpush1.bf16.msra.mxu0 0
    %114 = vmatprep.subr.bf16.mxu0 0
    %115 = vmatpush1.bf16.msra.mxu0 0
    %116 = vmatprep.subr.bf16.mxu0 0
    %117 = vmatpush1.bf16.msra.mxu0 0
    %118 = vmatprep.subr.bf16.mxu0 0
    %119 = vmatpush1.bf16.msra.mxu0 0
    %120 = vmatprep.subr.bf16.mxu0 0
    %121 = vmatpush1.bf16.msra.mxu0 0
    %122 = vmatprep.subr.bf16.mxu0 0
    %123 = vmatpush1.bf16.msra.mxu0 0
    %124 = vmatprep.subr.bf16.mxu0 0
    %125 = vmatpush1.bf16.msra.mxu0 0
    %126 = vmatprep.subr.bf16.mxu0 0
    %127 = vmatpush1.bf16.msra.mxu0 0
    %128 = vmatprep.subr.bf16.mxu0 0
    %129 = vmatpush1.bf16.msra.mxu0 0
    %130 = vmatprep.subr.bf16.mxu0 0
    %131 = vmatpush1.bf16.msra.mxu0 0
    %132 = vmatprep.subr.bf16.mxu0 0
    %133 = vmatpush1.bf16.msra.mxu0 0
    %134 = vmatprep.mubr.bf16.mxu0 0
    %135 = vmatmul.mubr.bf16.gmra.mrb[0].mxu0 %v100
    %v136 = vpop.f32.mrb[0].mxu0
    %v137 = vadd.f32 %v72, %v136
    %v138 = vpop.f32.mrb[0].mxu0
    %v139 = vpop.f32.mrb[0].mxu0
    %v140 = vpop.f32.mrb[0].mxu0
    %141 = vdwg.mxu0
    %v142 = vtanh.pop %v137
    %v143 = vld [vmem:[%s1] sm:$0xff]
    %145 = vset.pattern.permute.xlu0 0
    %146 = vperm.xlu0 %145, %v143
    %v147 = vpop.permute.xlu0 %146
    %v149 = vmul.f32 %v142, %v147
    %v150 = vpack.c.bf16 %v149, %v149
    %v151 = vld [vmem:[#allocation4] sm:$0xf]
    %v152 = vld [vmem:[#allocation4 + $0x4] sm:$0xf]
    %v153 = vld [vmem:[#allocation4 + $0x8] sm:$0xf]
    %v154 = vld [vmem:[#allocation4 + $0xc] sm:$0xf]
    %v155 = vld [vmem:[#allocation4 + $0x10] sm:$0xf]
    %v156 = vld [vmem:[#allocation4 + $0x14] sm:$0xf]
    %v157 = vld [vmem:[#allocation4 + $0x18] sm:$0xf]
    %v158 = vld [vmem:[#allocation4 + $0x1c] sm:$0xf]
    %v159 = vld [vmem:[%s5] sm:$0x1]
    %v161 = vlaneseq
    %v162 = vshrl.u32 %v161, 7
    %v163 = vsub.s32 0, %v162
    %v164 = vrot.slane %v159, %v163
    %v174 = vunpack.c.l.b16 %v151
    %v175 = vunpack.c.l.b16 %v152
    %v176 = vunpack.c.l.b16 %v153
    %v177 = vunpack.c.l.b16 %v154
    %v178 = vunpack.c.l.b16 %v155
    %v179 = vunpack.c.l.b16 %v156
    %v180 = vunpack.c.l.b16 %v157
    %v181 = vunpack.c.l.b16 %v158
    %v182 = vpack.c.b16 %v175, %v174
    %v183 = vpack.c.b16 %v177, %v176
    %v184 = vpack.c.b16 %v179, %v178
    %v185 = vpack.c.b16 %v181, %v180
    %v191 = vsel %vm98, %v150, 0
    %193 = vmatprep.subr.bf16.mxu0 0
    %194 = vmatpush1.bf16.msra.mxu0 %v182
    %195 = vmatprep.subr.bf16.mxu0 0
    %196 = vmatpush1.bf16.msra.mxu0 %v183
    %197 = vmatprep.subr.bf16.mxu0 0
    %198 = vmatpush1.bf16.msra.mxu0 %v184
    %199 = vmatprep.subr.bf16.mxu0 0
    %200 = vmatpush1.bf16.msra.mxu0 %v185
    %201 = vmatprep.subr.bf16.mxu0 0
    %202 = vmatpush1.bf16.msra.mxu0 0
    %203 = vmatprep.subr.bf16.mxu0 0
    %204 = vmatpush1.bf16.msra.mxu0 0
    %205 = vmatprep.subr.bf16.mxu0 0
    %206 = vmatpush1.bf16.msra.mxu0 0
    %207 = vmatprep.subr.bf16.mxu0 0
    %208 = vmatpush1.bf16.msra.mxu0 0
    %209 = vmatprep.subr.bf16.mxu0 0
    %210 = vmatpush1.bf16.msra.mxu0 0
    %211 = vmatprep.subr.bf16.mxu0 0
    %212 = vmatpush1.bf16.msra.mxu0 0
    %213 = vmatprep.subr.bf16.mxu0 0
    %214 = vmatpush1.bf16.msra.mxu0 0
    %215 = vmatprep.subr.bf16.mxu0 0
    %216 = vmatpush1.bf16.msra.mxu0 0
    %217 = vmatprep.subr.bf16.mxu0 0
    %218 = vmatpush1.bf16.msra.mxu0 0
    %219 = vmatprep.subr.bf16.mxu0 0
    %220 = vmatpush1.bf16.msra.mxu0 0
    %221 = vmatprep.subr.bf16.mxu0 0
    %222 = vmatpush1.bf16.msra.mxu0 0
    %223 = vmatprep.subr.bf16.mxu0 0
    %224 = vmatpush1.bf16.msra.mxu0 0
    %225 = vmatprep.mubr.bf16.mxu0 0
    %226 = vmatmul.mubr.bf16.gmra.mrb[0].mxu0 %v191
    %v227 = vpop.f32.mrb[0].mxu0
    %v228 = vadd.f32 %v164, %v227
    %v229 = vpop.f32.mrb[0].mxu0
    %v230 = vpop.f32.mrb[0].mxu0
    %v231 = vpop.f32.mrb[0].mxu0
    %232 = vdwg.mxu0
    %v233 = vmax.f32 %v228, 0.0
    %v234 = vpack.c.bf16 %v233, %v233
    %v235 = vld [vmem:[%s6] sm:$0xf]
    %v236 = vld [vmem:[%s6 + $0x4] sm:$0xf]
    %v237 = vld [vmem:[%s6 + $0x8] sm:$0xf]
    %v238 = vld [vmem:[%s6 + $0xc] sm:$0xf]
    %v239 = vld [vmem:[%s6 + $0x10] sm:$0xf]
    %v240 = vld [vmem:[%s6 + $0x14] sm:$0xf]
    %v241 = vld [vmem:[%s6 + $0x18] sm:$0xf]
    %v242 = vld [vmem:[%s6 + $0x1c] sm:$0xf]
    %v243 = vld [vmem:[%s6 + $0x20] sm:$0xf]
    %v244 = vld [vmem:[%s6 + $0x24] sm:$0xf]
    %v245 = vld [vmem:[%s6 + $0x28] sm:$0xf]
    %v246 = vld [vmem:[%s6 + $0x2c] sm:$0xf]
    %v247 = vld [vmem:[%s6 + $0x30] sm:$0xf]
    %v248 = vld [vmem:[%s6 + $0x34] sm:$0xf]
    %v249 = vld [vmem:[%s6 + $0x38] sm:$0xf]
    %v250 = vld [vmem:[%s6 + $0x3c] sm:$0xf]
    %v251 = vld [vmem:[%s7] sm:$0x1]
    %v253 = vlaneseq
    %v254 = vshrl.u32 %v253, 7
    %v255 = vsub.s32 0, %v254
    %v256 = vrot.slane %v251, %v255
    %v274 = vunpack.c.l.b16 %v235
    %v275 = vunpack.c.l.b16 %v236
    %v276 = vunpack.c.l.b16 %v237
    %v277 = vunpack.c.l.b16 %v238
    %v278 = vunpack.c.l.b16 %v239
    %v279 = vunpack.c.l.b16 %v240
    %v280 = vunpack.c.l.b16 %v241
    %v281 = vunpack.c.l.b16 %v242
    %v282 = vunpack.c.l.b16 %v243
    %v283 = vunpack.c.l.b16 %v244
    %v284 = vunpack.c.l.b16 %v245
    %v285 = vunpack.c.l.b16 %v246
    %v286 = vunpack.c.l.b16 %v247
    %v287 = vunpack.c.l.b16 %v248
    %v288 = vunpack.c.l.b16 %v249
    %v289 = vunpack.c.l.b16 %v250
    %v290 = vpack.c.b16 %v275, %v274
    %v291 = vpack.c.b16 %v277, %v276
    %v292 = vpack.c.b16 %v279, %v278
    %v293 = vpack.c.b16 %v281, %v280
    %v294 = vpack.c.b16 %v283, %v282
    %v295 = vpack.c.b16 %v285, %v284
    %v296 = vpack.c.b16 %v287, %v286
    %v297 = vpack.c.b16 %v289, %v288
    %306 = vmatprep.subr.bf16.mxu0 0
    %307 = vmatpush1.bf16.msra.mxu0 %v290
    %308 = vmatprep.subr.bf16.mxu0 0
    %309 = vmatpush1.bf16.msra.mxu0 %v291
    %310 = vmatprep.subr.bf16.mxu0 0
    %311 = vmatpush1.bf16.msra.mxu0 %v292
    %312 = vmatprep.subr.bf16.mxu0 0
    %313 = vmatpush1.bf16.msra.mxu0 %v293
    %314 = vmatprep.subr.bf16.mxu0 0
    %315 = vmatpush1.bf16.msra.mxu0 %v294
    %316 = vmatprep.subr.bf16.mxu0 0
    %317 = vmatpush1.bf16.msra.mxu0 %v295
    %318 = vmatprep.subr.bf16.mxu0 0
    %319 = vmatpush1.bf16.msra.mxu0 %v296
    %320 = vmatprep.subr.bf16.mxu0 0
    %321 = vmatpush1.bf16.msra.mxu0 %v297
    %322 = vmatprep.subr.bf16.mxu0 0
    %323 = vmatpush1.bf16.msra.mxu0 0
    %324 = vmatprep.subr.bf16.mxu0 0
    %325 = vmatpush1.bf16.msra.mxu0 0
    %326 = vmatprep.subr.bf16.mxu0 0
    %327 = vmatpush1.bf16.msra.mxu0 0
    %328 = vmatprep.subr.bf16.mxu0 0
    %329 = vmatpush1.bf16.msra.mxu0 0
    %330 = vmatprep.subr.bf16.mxu0 0
    %331 = vmatpush1.bf16.msra.mxu0 0
    %332 = vmatprep.subr.bf16.mxu0 0
    %333 = vmatpush1.bf16.msra.mxu0 0
    %334 = vmatprep.subr.bf16.mxu0 0
    %335 = vmatpush1.bf16.msra.mxu0 0
    %336 = vmatprep.subr.bf16.mxu0 0
    %337 = vmatpush1.bf16.msra.mxu0 0
    %338 = vmatprep.mubr.bf16.mxu0 0
    %339 = vmatmul.mubr.bf16.gmra.mrb[0].mxu0 %v234
    %v340 = vpop.f32.mrb[0].mxu0
    %v341 = vadd.f32 %v256, %v340
    %v342 = vpop.f32.mrb[0].mxu0
    %v343 = vpop.f32.mrb[0].mxu0
    %v344 = vpop.f32.mrb[0].mxu0
    %345 = vdwg.mxu0
    %v346 = vlaneseq
    %v347 = vand.u32 %v346, 127
    %vm348 = vcmp.eq.s32.totalorder %v347, 16
    %v349 = vxor.u32 %v341, 2147483648
    %v350 = vmul.f32 %v349, 1.442695
    %v351 = vpow.pop %v350
    %v352 = vadd.f32 %v351, 1.0
    %v353 = vrcp.pop %v352
    %v354 = vmul.f32 1.0, %v353
    %v355 = vsel %vm348, %v354, %v341
    %356 = vst [vmem:[%s8] sm:$0xff] %v355
    // Predicated region
    $region42: #{symptom_net_forward.1} parent=1 // pred_check
      _
    $region43: #{symptom_net_forward.1} parent=1 // pred_check_branch
      %358 = sbr.rel (0) target = $region45
    $region44: #{symptom_net_forward.1} parent=1 // pred_region
      _
    $region45: #{symptom_net_forward.1} parent=1 // pred_fallthru
      _
    // Predicated region
    $region46: #{symptom_net_forward.1} parent=1 // pred_check
      _
    $region47: #{symptom_net_forward.1} parent=1 // pred_check_branch
      %360 = sbr.rel (0) target = $region49
    $region48: #{symptom_net_forward.1} parent=1 // pred_region
      _
    $region49: #{symptom_net_forward.1} parent=1 // pred_fallthru
      _
    %361 = vsyncpa [#allocation3], 1
    %362 = vsyncpa [#allocation5], 1

</llo_original>
